<compile_context>
chip_gen: v6e
topology: v6e:2x2x1
jax: 0.10.0
libtpu: 0.0.40
codegen_flags: <defaults>
</compile_context>

<pallas_src>
import functools

import jax
import jax.numpy as jnp
from jax.experimental import pallas as pl
from jax.experimental.pallas import tpu as pltpu


def _round_up(a, b):
    return ((a + b - 1) // b) * b


def _chip_vmem_bytes():
    try:
        info = pltpu.get_tpu_info()
        return int(getattr(info, "vmem_capacity_bytes", 0) or 0)
    except Exception:
        return 0


def _pick_tile_n(hidden_pad, tn_req):
    """Lane-dense (multiple of 128) divisor of the (already padded) hidden dim."""
    if tn_req is not None:
        if tn_req >= hidden_pad:
            return hidden_pad
        if tn_req % 128 == 0 and hidden_pad % tn_req == 0:
            return tn_req
    for cand in (1024, 512, 256, 128):
        if cand <= hidden_pad and hidden_pad % cand == 0:
            return cand
    return hidden_pad


# ---------------------------------------------------------------------------
# Kernels
# ---------------------------------------------------------------------------

def _ffn_kernel_resident(x_ref, gamma_ref, beta_ref, w_ref, b_ref, o_ref, *, eps, inv_dim):
    """1-D grid over row tiles; full hidden dim per step; W^T block is grid-invariant
    (fetched once, kept resident in VMEM). x is read from HBM exactly once."""
    x = x_ref[...].astype(jnp.float32)

    # One-pass LayerNorm statistics (biased variance, eps inside rsqrt, PyTorch semantics).
    # Divisor is the true dim so zero-padded feature columns do not perturb mean/var.
    mean = jnp.sum(x, axis=-1, keepdims=True) * inv_dim
    ex2 = jnp.sum(x * x, axis=-1, keepdims=True) * inv_dim
    var = ex2 - mean * mean
    y = (x - mean) * jax.lax.rsqrt(var + eps) * gamma_ref[...] + beta_ref[...]

    # Linear: bf16 x bf16 -> f32 accumulation on the MXU.
    acc = jnp.dot(y.astype(w_ref.dtype), w_ref[...], preferred_element_type=jnp.float32)

    # Dropout(p=0.0) is identity; residual add reuses the already-resident x tile.
    # TODO(synk): non-zero dropout probability would need pltpu.prng_* masking here.
    o_ref[...] = (acc + b_ref[...] + x).astype(o_ref.dtype)


def _ffn_kernel_tiled(x_ref, xres_ref, gamma_ref, beta_ref, w_ref, b_ref, o_ref, y_ref,
                      *, eps, inv_dim):
    """2-D grid (rows, hidden tiles) for weights too large to keep resident.  The bf16 LN
    output is computed once per row tile (j == 0), cached in VMEM scratch and reused for
    every hidden tile, so the VPU/EUP LayerNorm pass is not repeated per hidden tile."""
    @pl.when(pl.program_id(1) == 0)
    def _():
        x = x_ref[...].astype(jnp.float32)
        mean = jnp.sum(x, axis=-1, keepdims=True) * inv_dim
        ex2 = jnp.sum(x * x, axis=-1, keepdims=True) * inv_dim
        var = ex2 - mean * mean
        y = (x - mean) * jax.lax.rsqrt(var + eps) * gamma_ref[...] + beta_ref[...]
        y_ref[...] = y.astype(y_ref.dtype)

    acc = jnp.dot(y_ref[...], w_ref[...], preferred_element_type=jnp.float32)
    # TODO(synk): slicing x_ref in-kernel (dynamic lane-offset pl.ds) would drop this small
    # residual input stream; kept as a BlockSpec input to stay on well-supported lowering.
    o_ref[...] = (acc + b_ref[...] + xres_ref[...].astype(jnp.float32)).astype(o_ref.dtype)


# ---------------------------------------------------------------------------
# Wrapper
# ---------------------------------------------------------------------------

def prepare_ffn_params(gamma, beta, weight, bias, *, compute_dtype=jnp.bfloat16):
    """One-time parameter prep (hoisted out of the per-call path): transpose the Linear
    weight, cast to the MXU dtype, and zero-pad everything to lane-dense (multiple-of-128)
    feature / hidden dims so the kernel never emits masked stores."""
    hidden, dim = weight.shape
    dim_pad = _round_up(dim, 128)
    hidden_pad = _round_up(hidden, 128)

    wT = jnp.zeros((dim_pad, hidden_pad), compute_dtype)
    wT = wT.at[:dim, :hidden].set(weight.T.astype(compute_dtype))
    gamma_p = jnp.zeros((1, dim_pad), jnp.float32).at[0, :dim].set(gamma.astype(jnp.float32))
    beta_p = jnp.zeros((1, dim_pad), jnp.float32).at[0, :dim].set(beta.astype(jnp.float32))
    bias_p = jnp.zeros((1, hidden_pad), jnp.float32).at[0, :hidden].set(bias.astype(jnp.float32))

    return {"wT": wT, "gamma": gamma_p, "beta": beta_p, "bias": bias_p,
            "dim": dim, "hidden": hidden}


def feedforward(x, params, *, eps=1e-5, tm=None, tn=None, resident_weight_limit_bytes=None):
    """FeedForward block: LayerNorm(x) @ W^T + b, Dropout(p=0) identity, + x residual.

    x: (B, N, dim).  params: output of prepare_ffn_params.  Returns (B, N, hidden).
    """
    B, N, dim = x.shape
    assert dim == params["dim"]
    hidden = params["hidden"]
    assert hidden == dim, "residual (out + x) requires hidden_dim == dim"

    wT = params["wT"]
    dim_pad, hidden_pad = wT.shape
    compute_dtype = wT.dtype
    out_dtype = x.dtype  # TODO(synk): allow bf16 output to halve writeback when consumers tolerate it.

    M = B * N
    x2 = x.reshape(M, dim)
    if dim_pad != dim:
        # Zero-pad the feature axis (lane-dense blocks); LN uses inv_dim so this is exact.
        x2 = jnp.pad(x2, ((0, 0), (0, dim_pad - dim)))

    in_bytes = x2.dtype.itemsize
    out_bytes = jnp.dtype(out_dtype).itemsize
    w_bytes = jnp.dtype(compute_dtype).itemsize

    vmem_cap = _chip_vmem_bytes()
    big_vmem = vmem_cap >= 100 * 1024 * 1024          # v5e/v6e have 128 MiB; v7x only 64 MiB
    if tm is None:
        tm = 512 if (big_vmem and dim_pad <= 1024) else 256
    if resident_weight_limit_bytes is None:
        resident_weight_limit_bytes = (16 if big_vmem else 8) * 1024 * 1024

    tm_eff = min(tm, _round_up(M, 8))                  # big row tiles; clamp for tiny M
    weight_bytes = dim_pad * hidden_pad * w_bytes
    resident = weight_bytes <= resident_weight_limit_bytes
    tn_eff = hidden_pad if resident else _pick_tile_n(hidden_pad, tn)

    num_row_tiles = pl.cdiv(M, tm_eff)
    inv_dim = 1.0 / dim

    # VMEM budget: x tiles + weight blocks + output tiles + LN scratch + f32 LN temps headroom.
    vmem_need = (2 * tm_eff * dim_pad * in_bytes
                 + 2 * dim_pad * tn_eff * w_bytes
                 + 2 * tm_eff * tn_eff * (out_bytes + in_bytes)
                 + tm_eff * dim_pad * w_bytes
                 + 4 * tm_eff * dim_pad * 4
                 + 4 * (2 * dim_pad + tn_eff) * 4)
    vmem_cap_limit = (96 if big_vmem else 48) * 1024 * 1024   # stay well below v7x's 64 MiB
    vmem_limit = int(min(max(vmem_need, 16 * 1024 * 1024), vmem_cap_limit))

    # Cost estimate matching the actual DMA traffic of the chosen path.
    if resident:
        bytes_accessed = (M * dim_pad * in_bytes            # x read once
                          + weight_bytes                     # resident weight, fetched once
                          + M * hidden_pad * out_bytes
                          + (2 * dim_pad + hidden_pad) * 4)
    else:
        bytes_accessed = (M * dim_pad * in_bytes             # x full-dim block, once per row tile
                          + M * hidden_pad * in_bytes        # residual slices
                          + num_row_tiles * weight_bytes     # weight streamed per row tile
                          + M * hidden_pad * out_bytes
                          + (2 * dim_pad + hidden_pad) * 4)
    cost = pl.CostEstimate(
        flops=2 * M * dim_pad * hidden_pad + 10 * M * dim_pad,
        transcendentals=M,                                   # one rsqrt per row (LN once per row)
        bytes_accessed=int(bytes_accessed))

    if resident:
        grid = (num_row_tiles,)
        kernel = functools.partial(_ffn_kernel_resident, eps=eps, inv_dim=inv_dim)
        in_specs = [
            pl.BlockSpec((tm_eff, dim_pad), lambda i: (i, 0)),        # x rows (LN + LHS + residual)
            pl.BlockSpec((1, dim_pad), lambda i: (0, 0)),             # LN gamma
            pl.BlockSpec((1, dim_pad), lambda i: (0, 0)),             # LN beta
            pl.BlockSpec((dim_pad, hidden_pad), lambda i: (0, 0)),    # W^T, grid-invariant => resident
            pl.BlockSpec((1, hidden_pad), lambda i: (0, 0)),          # bias
        ]
        out_specs = pl.BlockSpec((tm_eff, hidden_pad), lambda i: (i, 0))
        scratch_shapes = ()
        semantics = ("parallel",)                                     # rows shard across v7x's 2 TCs
        args = (x2, params["gamma"], params["beta"], wT, params["bias"])
    else:
        grid = (num_row_tiles, hidden_pad // tn_eff)
        kernel = functools.partial(_ffn_kernel_tiled, eps=eps, inv_dim=inv_dim)
        in_specs = [
            pl.BlockSpec((tm_eff, dim_pad), lambda i, j: (i, 0)),     # x rows, invariant over j
            pl.BlockSpec((tm_eff, tn_eff), lambda i, j: (i, j)),      # residual slice
            pl.BlockSpec((1, dim_pad), lambda i, j: (0, 0)),          # gamma
            pl.BlockSpec((1, dim_pad), lambda i, j: (0, 0)),          # beta
            pl.BlockSpec((dim_pad, tn_eff), lambda i, j: (0, j)),     # W^T tile (streamed)
            pl.BlockSpec((1, tn_eff), lambda i, j: (0, j)),           # bias tile
        ]
        out_specs = pl.BlockSpec((tm_eff, tn_eff), lambda i, j: (i, j))
        scratch_shapes = (pltpu.VMEM((tm_eff, dim_pad), compute_dtype),)   # cached bf16 LN output
        semantics = ("parallel", "arbitrary")
        args = (x2, x2, params["gamma"], params["beta"], wT, params["bias"])

    out = pl.pallas_call(
        kernel,
        out_shape=jax.ShapeDtypeStruct((M, hidden_pad), out_dtype),
        grid_spec=pltpu.PrefetchScalarGridSpec(
            num_scalar_prefetch=0,
            grid=grid,
            in_specs=in_specs,
            out_specs=out_specs,
            scratch_shapes=scratch_shapes),
        compiler_params=pltpu.CompilerParams(
            dimension_semantics=semantics,
            vmem_limit_bytes=vmem_limit),
        cost_estimate=cost,
    )(*args)

    if hidden_pad != hidden:
        out = out[:, :hidden]
    return out.reshape(B, N, hidden)


# ---------------------------------------------------------------------------
# Reference + self-test
# ---------------------------------------------------------------------------

def _reference(x, gamma, beta, weight, bias, eps=1e-5):
    mean = jnp.mean(x, axis=-1, keepdims=True)
    var = jnp.mean((x - mean) ** 2, axis=-1, keepdims=True)
    xn = (x - mean) / jnp.sqrt(var + eps)
    y = xn * gamma + beta
    out = y @ weight.T + bias
    return out + x


def _run_case(key, B, N, dim, **ffn_kwargs):
    kx, kw, kb, kg, kbt = jax.random.split(key, 5)
    x = jax.random.normal(kx, (B, N, dim), dtype=jnp.float32)
    gamma = 1.0 + 0.1 * jax.random.normal(kg, (dim,), dtype=jnp.float32)
    beta = 0.1 * jax.random.normal(kbt, (dim,), dtype=jnp.float32)
    bound = 1.0 / (dim ** 0.5)
    weight = jax.random.uniform(kw, (dim, dim), minval=-bound, maxval=bound, dtype=jnp.float32)
    bias = jax.random.uniform(kb, (dim,), minval=-bound, maxval=bound, dtype=jnp.float32)

    params = prepare_ffn_params(gamma, beta, weight, bias)   # one-time prep, hoisted out of the call
    out = feedforward(x, params, **ffn_kwargs)
    out = jax.block_until_ready(out)

    ref = _reference(x, gamma, beta, weight, bias)
    assert out.shape == (B, N, dim)
    # bf16 matmul path (f32 accumulation): loosened tolerance vs. pure-f32 reference.
    assert jnp.allclose(out, ref, atol=5e-2, rtol=5e-2), "mismatch vs reference"


if __name__ == "__main__":
    key = jax.random.PRNGKey(0)
    k1, k2, k3 = jax.random.split(key, 3)

    # Small shape consistent with the module: (batch=2, seq=8, dim=mlp_dim=32); dim padded to 128.
    _run_case(k1, B=2, N=8, dim=32)

    # Larger shape exercising the resident-weight (1-D row grid) fast path with multiple row tiles.
    _run_case(k2, B=2, N=256, dim=256)

    # Force the 2-D tiled fallback (hidden axis tiled, bf16 LN output cached in VMEM scratch).
    _run_case(k3, B=2, N=256, dim=256, resident_weight_limit_bytes=0, tn=128)

    print("KERNEL_OK")
</pallas_src>

<mosaic_0001>
module attributes {stable_mosaic.version = 11 : i64} {
  func.func @_ffn_kernel_resident(%arg0: i32, %arg1: memref<16x128xf32, #tpu.memory_space<vmem>>, %arg2: memref<1x128xf32, #tpu.memory_space<vmem>>, %arg3: memref<1x128xf32, #tpu.memory_space<vmem>>, %arg4: memref<128x128xbf16, #tpu.memory_space<vmem>>, %arg5: memref<1x128xf32, #tpu.memory_space<vmem>>, %arg6: memref<16x128xf32, #tpu.memory_space<vmem>>) attributes {dimension_semantics = [#tpu.dimension_semantics<parallel>], iteration_bounds = array<i64: 1>, scalar_prefetch = 0 : i64, scratch_operands = 0 : i64, tpu.core_type = #tpu.core_type<tc>, window_params = [{transform_indices = @transform_0, window_bounds = array<i64: 16, 128>}, {pipeline_mode = #tpu.pipeline_mode<synchronous>, transform_indices = @transform_1, window_bounds = array<i64: 1, 128>}, {pipeline_mode = #tpu.pipeline_mode<synchronous>, transform_indices = @transform_2, window_bounds = array<i64: 1, 128>}, {pipeline_mode = #tpu.pipeline_mode<synchronous>, transform_indices = @transform_3, window_bounds = array<i64: 128, 128>}, {pipeline_mode = #tpu.pipeline_mode<synchronous>, transform_indices = @transform_4, window_bounds = array<i64: 1, 128>}, {transform_indices = @transform_5, window_bounds = array<i64: 16, 128>}]} {
    %c0 = arith.constant 0 : index
    %c0_0 = arith.constant 0 : index
    %0 = vector.load %arg1[%c0, %c0_0] : memref<16x128xf32, #tpu.memory_space<vmem>>, vector<16x128xf32>
    %cst = arith.constant dense<0.000000e+00> : vector<16xf32>
    %1 = vector.multi_reduction <add>, %0, %cst [1] : vector<16x128xf32> to vector<16xf32>
    %2 = vector.shape_cast %1 : vector<16xf32> to vector<16x1xf32>
    %cst_1 = arith.constant 3.125000e-02 : f32
    %3 = vector.broadcast %cst_1 : f32 to vector<16x1xf32>
    %4 = arith.mulf %2, %3 : vector<16x1xf32>
    %5 = arith.mulf %0, %0 : vector<16x128xf32>
    %cst_2 = arith.constant dense<0.000000e+00> : vector<16xf32>
    %6 = vector.multi_reduction <add>, %5, %cst_2 [1] : vector<16x128xf32> to vector<16xf32>
    %7 = vector.shape_cast %6 : vector<16xf32> to vector<16x1xf32>
    %cst_3 = arith.constant 3.125000e-02 : f32
    %8 = vector.broadcast %cst_3 : f32 to vector<16x1xf32>
    %9 = arith.mulf %7, %8 : vector<16x1xf32>
    %10 = arith.mulf %4, %4 : vector<16x1xf32>
    %11 = arith.subf %9, %10 : vector<16x1xf32>
    %12 = vector.broadcast %4 : vector<16x1xf32> to vector<16x128xf32>
    %13 = arith.subf %0, %12 : vector<16x128xf32>
    %cst_4 = arith.constant 9.99999974E-6 : f32
    %14 = vector.broadcast %cst_4 : f32 to vector<16x1xf32>
    %15 = arith.addf %11, %14 : vector<16x1xf32>
    %16 = math.rsqrt %15 : vector<16x1xf32>
    %17 = vector.broadcast %16 : vector<16x1xf32> to vector<16x128xf32>
    %18 = arith.mulf %13, %17 : vector<16x128xf32>
    %c0_5 = arith.constant 0 : index
    %c0_6 = arith.constant 0 : index
    %19 = vector.load %arg2[%c0_5, %c0_6] : memref<1x128xf32, #tpu.memory_space<vmem>>, vector<1x128xf32>
    %20 = vector.broadcast %19 : vector<1x128xf32> to vector<16x128xf32>
    %21 = arith.mulf %18, %20 : vector<16x128xf32>
    %c0_7 = arith.constant 0 : index
    %c0_8 = arith.constant 0 : index
    %22 = vector.load %arg3[%c0_7, %c0_8] : memref<1x128xf32, #tpu.memory_space<vmem>>, vector<1x128xf32>
    %23 = vector.broadcast %22 : vector<1x128xf32> to vector<16x128xf32>
    %24 = arith.addf %21, %23 : vector<16x128xf32>
    %25 = arith.truncf %24 : vector<16x128xf32> to vector<16x128xbf16>
    %c0_9 = arith.constant 0 : index
    %c0_10 = arith.constant 0 : index
    %26 = vector.load %arg4[%c0_9, %c0_10] : memref<128x128xbf16, #tpu.memory_space<vmem>>, vector<128x128xbf16>
    %cst_11 = arith.constant dense<0.000000e+00> : vector<16x128xf32>
    %27 = tpu.matmul %25, %26, %cst_11 {dimension_numbers = #tpu.dot_dimension_numbers<[1], [0], [0], [1], [0, 0, 1, 1], [], []>} : vector<16x128xbf16>, vector<128x128xbf16>, vector<16x128xf32> -> vector<16x128xf32>
    %c0_12 = arith.constant 0 : index
    %c0_13 = arith.constant 0 : index
    %28 = vector.load %arg5[%c0_12, %c0_13] : memref<1x128xf32, #tpu.memory_space<vmem>>, vector<1x128xf32>
    %29 = vector.broadcast %28 : vector<1x128xf32> to vector<16x128xf32>
    %30 = arith.addf %27, %29 : vector<16x128xf32>
    %31 = arith.addf %30, %0 : vector<16x128xf32>
    %c0_14 = arith.constant 0 : index
    %c0_15 = arith.constant 0 : index
    %32 = vector.load %arg6[%c0_14, %c0_15] : memref<16x128xf32, #tpu.memory_space<vmem>>, vector<16x128xf32>
    tpu.vector_store %arg6[%c0_14, %c0_15], %31 {strides = array<i32>} : memref<16x128xf32, #tpu.memory_space<vmem>>, vector<16x128xf32>,
    return
  }
  func.func @transform_0(%arg0: i32) -> (i32, i32) {
    %c0_i32 = arith.constant 0 : i32
    %c0_i32_0 = arith.constant 0 : i32
    return %arg0, %c0_i32 : i32, i32
  }
  func.func @transform_1(%arg0: i32) -> (i32, i32) {
    %c0_i32 = arith.constant 0 : i32
    %c0_i32_0 = arith.constant 0 : i32
    %c0_i32_1 = arith.constant 0 : i32
    return %c0_i32, %c0_i32_0 : i32, i32
  }
  func.func @transform_2(%arg0: i32) -> (i32, i32) {
    %c0_i32 = arith.constant 0 : i32
    %c0_i32_0 = arith.constant 0 : i32
    %c0_i32_1 = arith.constant 0 : i32
    return %c0_i32, %c0_i32_0 : i32, i32
  }
  func.func @transform_3(%arg0: i32) -> (i32, i32) {
    %c0_i32 = arith.constant 0 : i32
    %c0_i32_0 = arith.constant 0 : i32
    %c0_i32_1 = arith.constant 0 : i32
    return %c0_i32, %c0_i32_0 : i32, i32
  }
  func.func @transform_4(%arg0: i32) -> (i32, i32) {
    %c0_i32 = arith.constant 0 : i32
    %c0_i32_0 = arith.constant 0 : i32
    %c0_i32_1 = arith.constant 0 : i32
    return %c0_i32, %c0_i32_0 : i32, i32
  }
  func.func @transform_5(%arg0: i32) -> (i32, i32) {
    %c0_i32 = arith.constant 0 : i32
    %c0_i32_0 = arith.constant 0 : i32
    return %arg0, %c0_i32 : i32, i32
  }
}

</mosaic_0001>

<llo_original>
// kernel: tpu_custom_call.1
$region0: #{tpu_custom_call.1}
  #allocation0 [shape = 'u32[]', space=smem, size = 0x4, offset = 0x4, fixed_abs, tag = 'smem constant byte address 0x4 - core index']
  #allocation1 [shape = 'u32[144,128]{1,0:T(1,128)}', space=vmem, size = 0x12000, scoped, tag = 'internal scratch']
  %s0 = inlined_call_operand.hbm [shape: f32[16,128], index: 0, kind: input, shape index: {}]
  %s1 = inlined_call_operand.vmem [shape: f32[1,128], index: 1, kind: input, shape index: {}]
  %s2 = inlined_call_operand.vmem [shape: f32[1,128], index: 2, kind: input, shape index: {}]
  %s3 = inlined_call_operand.hbm [shape: bf16[128,128], index: 3, kind: input, shape index: {}]
  %s4 = inlined_call_operand.vmem [shape: f32[1,128], index: 4, kind: input, shape index: {}]
  %s5 = inlined_call_operand.hbm [shape: f32[16,128], index: 5, kind: output, shape index: {}]
  %s6 = sld [smem:[#allocation0]]
  $region38: #{tpu_custom_call.1} parent=0
    _
  %s8 = ssub.s32 1, %s6
  %s9 = scalar_select 0, %s8, %s6
  $region1: #{tpu_custom_call.1} parent=0
    #allocation2 [shape = 'u8[8192]{0}', space=vmem, size = 0x2000, scoped, tag = 'input window, operand 0, single buffered']
    #allocation3 [shape = 's32[1]{0}', space=sflag, size = 0x4, scoped, tag = 'scoped memory for tpu_custom_call.1']
    #allocation4 [shape = 's32[1]{0}', space=sflag, size = 0x4, scoped, tag = 'scoped memory for tpu_custom_call.1']
    #allocation5 [shape = 'u8[32768]{0}', space=vmem, size = 0x8000, scoped, tag = 'input window, operand 3, single buffered']
    #allocation6 [shape = 's32[1]{0}', space=sflag, size = 0x4, scoped, tag = 'scoped memory for tpu_custom_call.1']
    #allocation7 [shape = 'u8[8192]{0}', space=vmem, size = 0x2000, scoped, tag = 'output window, operand 0, single buffered']
    %10 = vsyncpa [#allocation3], 0
    %11 = vsyncpa [#allocation6], 0
    %12 = vsyncpa [#allocation4], 0
    // Predicated region
    $region2: #{tpu_custom_call.1} parent=1 // pred_check
      _
    $region3: #{tpu_custom_call.1} parent=1 // pred_check_branch
      %14 = sbr.rel (0) target = $region5
    $region4: #{tpu_custom_call.1} parent=1 // pred_region
      %s16 = ssub.s32 256, 256
      %17 = vsyncadd [#allocation3], %s16
      %s18 = sshll.u32 [#allocation2], 4
      %s19 = int_to_ptr.vmem [resolvable:$true] %s18
      %24 = dma.hbm_to_vmem [thread:$0]  %s0, 256, %s19, [#allocation3], 128, 128, 8
    $region5: #{tpu_custom_call.1} parent=1 // pred_fallthru
      _
    // Predicated region
    $region6: #{tpu_custom_call.1} parent=1 // pred_check
      _
    $region7: #{tpu_custom_call.1} parent=1 // pred_check_branch
      %26 = sbr.rel (0) target = $region9
    $region8: #{tpu_custom_call.1} parent=1 // pred_region
      _
    $region9: #{tpu_custom_call.1} parent=1 // pred_fallthru
      _
    // Predicated region
    $region10: #{tpu_custom_call.1} parent=1 // pred_check
      _
    $region11: #{tpu_custom_call.1} parent=1 // pred_check_branch
      %28 = sbr.rel (0) target = $region13
    $region12: #{tpu_custom_call.1} parent=1 // pred_region
      _
    $region13: #{tpu_custom_call.1} parent=1 // pred_fallthru
      _
    // Predicated region
    $region14: #{tpu_custom_call.1} parent=1 // pred_check
      _
    $region15: #{tpu_custom_call.1} parent=1 // pred_check_branch
      %30 = sbr.rel (0) target = $region17
    $region16: #{tpu_custom_call.1} parent=1 // pred_region
      %s32 = ssub.s32 1024, 1024
      %33 = vsyncadd [#allocation6], %s32
      %s34 = sshll.u32 [#allocation5], 4
      %s35 = int_to_ptr.vmem [resolvable:$true] %s34
      %40 = dma.hbm_to_vmem [thread:$0]  %s3, 1024, %s35, [#allocation6], 64, 64, 4
    $region17: #{tpu_custom_call.1} parent=1 // pred_fallthru
      _
    // Predicated region
    $region18: #{tpu_custom_call.1} parent=1 // pred_check
      _
    $region19: #{tpu_custom_call.1} parent=1 // pred_check_branch
      %42 = sbr.rel (0) target = $region21
    $region20: #{tpu_custom_call.1} parent=1 // pred_region
      _
    $region21: #{tpu_custom_call.1} parent=1 // pred_fallthru
      _
    // Predicated region
    $region22: #{tpu_custom_call.1} parent=1 // pred_check
      _
    $region23: #{tpu_custom_call.1} parent=1 // pred_check_branch
      %44 = sbr.rel (0) target = $region25
    $region24: #{tpu_custom_call.1} parent=1 // pred_region
      %45 = dma.done [#allocation3], 256
    $region25: #{tpu_custom_call.1} parent=1 // pred_fallthru
      _
    // Predicated region
    $region26: #{tpu_custom_call.1} parent=1 // pred_check
      _
    $region27: #{tpu_custom_call.1} parent=1 // pred_check_branch
      %47 = sbr.rel (0) target = $region29
    $region28: #{tpu_custom_call.1} parent=1 // pred_region
      %48 = dma.done [#allocation6], 1024
    $region29: #{tpu_custom_call.1} parent=1 // pred_fallthru
      _
    %v50 = vld [vmem:[#allocation2] sm:$0xff]
    %v51 = vld [vmem:[#allocation2 + $0x8] sm:$0xff]
    %52 = vadd.xlane.f32.xlu0 %v50
    %v53 = vpop.xlane.xlu0 %52
    %54 = vadd.xlane.f32.xlu0 %v51
    %v55 = vpop.xlane.xlu0 %54
    %v56 = vmul.f32 %v53, 0.03125
    %v57 = vmul.f32 %v55, 0.03125
    %v58 = vmul.f32 %v50, %v50
    %v59 = vmul.f32 %v51, %v51
    %60 = vadd.xlane.f32.xlu0 %v58
    %v61 = vpop.xlane.xlu0 %60
    %62 = vadd.xlane.f32.xlu0 %v59
    %v63 = vpop.xlane.xlu0 %62
    %v64 = vmul.f32 %v61, 0.03125
    %v65 = vmul.f32 %v63, 0.03125
    %v66 = vmul.f32 %v56, %v56
    %v67 = vmul.f32 %v57, %v57
    %v68 = vsub.f32 %v64, %v66
    %v69 = vsub.f32 %v65, %v67
    %v70 = vsub.f32 %v50, %v56
    %v71 = vsub.f32 %v51, %v57
    %v72 = vadd.f32 %v68, 1e-05
    %v73 = vadd.f32 %v69, 1e-05
    %v74 = vrsqrt.pop %v72
    %v75 = vrsqrt.pop %v73
    %v76 = vmul.f32 %v70, %v74
    %v77 = vmul.f32 %v71, %v75
    %v78 = vld [vmem:[%s1] sm:$0x1]
    %v80 = vlaneseq
    %v81 = vshrl.u32 %v80, 7
    %v82 = vsub.s32 0, %v81
    %v83 = vrot.slane %v78, %v82
    %v85 = vmul.f32 %v76, %v83
    %v86 = vmul.f32 %v77, %v83
    %v87 = vld [vmem:[%s2] sm:$0x1]
    %v89 = vlaneseq
    %v90 = vshrl.u32 %v89, 7
    %v91 = vsub.s32 0, %v90
    %v92 = vrot.slane %v87, %v91
    %v94 = vadd.f32 %v85, %v92
    %v95 = vadd.f32 %v86, %v92
    %v96 = vpack.c.bf16 %v95, %v94
    %v97 = vld [vmem:[#allocation5] sm:$0xf]
    %v98 = vld [vmem:[#allocation5 + $0x4] sm:$0xf]
    %v99 = vld [vmem:[#allocation5 + $0x8] sm:$0xf]
    %v100 = vld [vmem:[#allocation5 + $0xc] sm:$0xf]
    %v101 = vld [vmem:[#allocation5 + $0x10] sm:$0xf]
    %v102 = vld [vmem:[#allocation5 + $0x14] sm:$0xf]
    %v103 = vld [vmem:[#allocation5 + $0x18] sm:$0xf]
    %v104 = vld [vmem:[#allocation5 + $0x1c] sm:$0xf]
    %v105 = vld [vmem:[#allocation5 + $0x20] sm:$0xf]
    %v106 = vld [vmem:[#allocation5 + $0x24] sm:$0xf]
    %v107 = vld [vmem:[#allocation5 + $0x28] sm:$0xf]
    %v108 = vld [vmem:[#allocation5 + $0x2c] sm:$0xf]
    %v109 = vld [vmem:[#allocation5 + $0x30] sm:$0xf]
    %v110 = vld [vmem:[#allocation5 + $0x34] sm:$0xf]
    %v111 = vld [vmem:[#allocation5 + $0x38] sm:$0xf]
    %v112 = vld [vmem:[#allocation5 + $0x3c] sm:$0xf]
    %v113 = vld [vmem:[%s4] sm:$0x1]
    %v115 = vlaneseq
    %v116 = vshrl.u32 %v115, 7
    %v117 = vsub.s32 0, %v116
    %v118 = vrot.slane %v113, %v117
    %v136 = vunpack.c.l.b16 %v97
    %v137 = vunpack.c.l.b16 %v98
    %v138 = vunpack.c.l.b16 %v99
    %v139 = vunpack.c.l.b16 %v100
    %v140 = vunpack.c.l.b16 %v101
    %v141 = vunpack.c.l.b16 %v102
    %v142 = vunpack.c.l.b16 %v103
    %v143 = vunpack.c.l.b16 %v104
    %v144 = vunpack.c.l.b16 %v105
    %v145 = vunpack.c.l.b16 %v106
    %v146 = vunpack.c.l.b16 %v107
    %v147 = vunpack.c.l.b16 %v108
    %v148 = vunpack.c.l.b16 %v109
    %v149 = vunpack.c.l.b16 %v110
    %v150 = vunpack.c.l.b16 %v111
    %v151 = vunpack.c.l.b16 %v112
    %v152 = vpack.c.b16 %v137, %v136
    %v153 = vpack.c.b16 %v139, %v138
    %v154 = vpack.c.b16 %v141, %v140
    %v155 = vpack.c.b16 %v143, %v142
    %v156 = vpack.c.b16 %v145, %v144
    %v157 = vpack.c.b16 %v147, %v146
    %v158 = vpack.c.b16 %v149, %v148
    %v159 = vpack.c.b16 %v151, %v150
    %168 = vmatprep.subr.bf16.mxu0 0
    %169 = vmatpush1.bf16.msra.mxu0 %v159
    %170 = vmatprep.subr.bf16.mxu0 0
    %171 = vmatpush1.bf16.msra.mxu0 %v158
    %172 = vmatprep.subr.bf16.mxu0 0
    %173 = vmatpush1.bf16.msra.mxu0 %v157
    %174 = vmatprep.subr.bf16.mxu0 0
    %175 = vmatpush1.bf16.msra.mxu0 %v156
    %176 = vmatprep.subr.bf16.mxu0 0
    %177 = vmatpush1.bf16.msra.mxu0 %v155
    %178 = vmatprep.subr.bf16.mxu0 0
    %179 = vmatpush1.bf16.msra.mxu0 %v154
    %180 = vmatprep.subr.bf16.mxu0 0
    %181 = vmatpush1.bf16.msra.mxu0 %v153
    %182 = vmatprep.subr.bf16.mxu0 0
    %183 = vmatpush1.bf16.msra.mxu0 %v152
    %184 = vmatprep.subr.bf16.mxu0 0
    %185 = vmatpush2.bf16.msra.mxu0 0
    %186 = vmatprep.subr.bf16.mxu0 0
    %187 = vmatpush2.bf16.msra.mxu0 0
    %188 = vmatprep.subr.bf16.mxu0 0
    %189 = vmatpush2.bf16.msra.mxu0 0
    %190 = vmatprep.subr.bf16.mxu0 0
    %191 = vmatpush2.bf16.msra.mxu0 0
    %192 = vmatprep.subr.bf16.mxu0 0
    %193 = vmatpush2.bf16.msra.mxu0 0
    %194 = vmatprep.subr.bf16.mxu0 0
    %195 = vmatpush2.bf16.msra.mxu0 0
    %196 = vmatprep.subr.bf16.mxu0 0
    %197 = vmatpush2.bf16.msra.mxu0 0
    %198 = vmatprep.subr.bf16.mxu0 0
    %199 = vmatpush2.bf16.msra.mxu0 0
    %200 = vmatprep.mubr.bf16.mxu0 0
    %201 = vmatmul.mubr.bf16.gmra.mxu0 %v96
    %v202 = vpop.f32.mrf.mxu0
    %v203 = vadd.f32 %v118, %v202
    %v204 = vpop.f32.mrf.mxu0
    %v205 = vpop.f32.mrf.mxu0
    %v206 = vadd.f32 %v118, %v205
    %v207 = vpop.f32.mrf.mxu0
    %208 = vdwg.mxu0
    %v209 = vadd.f32 %v203, %v50
    %v210 = vadd.f32 %v206, %v51
    %211 = vst [vmem:[#allocation7] sm:$0xff] %v209
    %212 = vst [vmem:[#allocation7 + $0x8] sm:$0xff] %v210
    // Predicated region
    $region30: #{tpu_custom_call.1} parent=1 // pred_check
      _
    $region31: #{tpu_custom_call.1} parent=1 // pred_check_branch
      %214 = sbr.rel (0) target = $region33
    $region32: #{tpu_custom_call.1} parent=1 // pred_region
      %s216 = ssub.s32 256, 256
      %217 = vsyncadd [#allocation4], %s216
      %s218 = sshll.u32 [#allocation7], 4
      %s219 = int_to_ptr.vmem [resolvable:$true] %s218
      %224 = dma.vmem_to_hbm [thread:$0]  %s219, 256, %s5, [#allocation4], 128, 128, 8
    $region33: #{tpu_custom_call.1} parent=1 // pred_fallthru
      _
    // Predicated region
    $region34: #{tpu_custom_call.1} parent=1 // pred_check
      _
    $region35: #{tpu_custom_call.1} parent=1 // pred_check_branch
      %226 = sbr.rel (0) target = $region37
    $region36: #{tpu_custom_call.1} parent=1 // pred_region
      %227 = dma.done [#allocation4], 256
    $region37: #{tpu_custom_call.1} parent=1 // pred_fallthru
      _
    %228 = vsyncpa [#allocation3], 1
    %229 = vsyncpa [#allocation6], 1
    %230 = vsyncpa [#allocation4], 1

</llo_original>
